<compile_context>
chip_gen: v5e
topology: v5e:2x2
jax: 0.10.0
libtpu: 0.0.40
codegen_flags: <defaults>
</compile_context>

<pallas_src>
import jax
import jax.numpy as jnp
from jax.experimental import pallas as pl
from jax.experimental.pallas import tpu as pltpu


def _round_up(x: int, m: int) -> int:
    return ((x + m - 1) // m) * m


def _make_kernel(q):
    def kernel(logits_ref, tgt_ref, out_ref):
        # logits_ref: (TN, C) input dtype;  tgt_ref: (1, 1, TN) int32;  out_ref: (1, 1, TN) f32
        logits = logits_ref[...].astype(jnp.float32)          # upcast in VMEM only
        tn, c = logits.shape

        # lane-dense targets row -> per-row column (small 32-bit relayout, XLU has slack here)
        tgt_col = jnp.transpose(tgt_ref[0], (1, 0))           # (TN, 1) int32

        # numerically-stable log-softmax pieces
        m = jnp.max(logits, axis=1, keepdims=True)            # (TN, 1)
        z = logits - m                                         # (TN, C)
        lse = jnp.log(jnp.sum(jnp.exp(z), axis=1, keepdims=True))  # (TN, 1)

        # target logit (shifted by m) without a float one-hot matmul.
        # Precondition (same as the torch module): 0 <= targets < C.
        col = jax.lax.broadcasted_iota(jnp.int32, (tn, c), 1)
        z_t = jnp.sum(jnp.where(col == tgt_col, z, 0.0), axis=1, keepdims=True)

        logp_t = z_t - lse                                     # log softmax prob of target class
        loss = (-logp_t) * jnp.exp(q * logp_t) * q             # CE * p_t**q * q   (TN, 1) f32

        # sublane -> lane relayout so the HBM store is a dense lane row (unmasked vst).
        out_ref[0] = jnp.transpose(loss, (1, 0))               # (1, TN)
    return kernel


def _hw_params():
    """(vmem_capacity_bytes, target HBM bytes per grid step, min grid steps) per generation."""
    vmem_cap = 64 * 1024 * 1024                 # conservative default (v7x per-TC)
    try:
        vmem_cap = int(pltpu.get_tpu_info().vmem_capacity_bytes)
    except Exception:
        pass
    kind = ""
    try:
        kind = jax.devices()[0].device_kind.lower()
    except Exception:
        pass
    if "v7" in kind:
        # ~3.2 TB/s per TC exposes the ~0.35 us/step overhead -> big steps; 2 TCs -> >=8 steps.
        return vmem_cap, 12 * 1024 * 1024, 8
    if "v6" in kind:
        return vmem_cap, 5 * 1024 * 1024, 4
    # v5e / unknown: already HBM-bound at ~2-4 MiB per step.
    return vmem_cap, 3 * 1024 * 1024, 4


def _pick_block_rows(n, c, itemsize, vmem_limit, hbm_step_target, min_steps):
    """Row tile: amortize per-step overhead, respect lane-padded VMEM footprint."""
    sub = 8 * max(1, 4 // itemsize)             # sublane granule: 8 f32, 16 bf16, 32 int8/fp8
    c_pad = _round_up(c, 128)                   # lanes are padded to 128 in VMEM / vregs

    # per-row footprints (lane-padding aware)
    hbm_row = c * itemsize + 8                                  # logits + target + loss in HBM
    vmem_row = 2 * c_pad * itemsize             # double-buffered input tile
    vmem_row += 3 * c_pad * 4                   # ~3 live block-sized f32 temporaries
    vmem_row += 4 * 512                         # a few (TN,1) f32 columns, lane-padded to 128
    vmem_row += 2 * 4 + 2 * 4                   # lane-dense targets + output (double-buffered)

    rows_hbm = max(sub, hbm_step_target // hbm_row)
    rows_vmem = max(sub, (3 * vmem_limit // 4) // vmem_row)     # leave internal-scratch headroom
    rows = min(rows_hbm, rows_vmem, 32768)

    # keep >= min_steps grid steps when the batch allows it (pipelining; v7x 2-TC sharding),
    # and never blow a tiny batch up to a huge, mostly-padded tile.
    rows = min(rows, max(sub, _round_up(pl.cdiv(n, min_steps), sub)))
    rows = min(rows, _round_up(n, sub))
    if rows >= 128:                              # keep the lane-dense output block 128-aligned
        rows = (rows // 128) * 128
    return max(sub, (rows // sub) * sub)


def generalized_ce_loss(logits, targets, q: float = 0.7, block_rows=None):
    """Pallas TPU forward of GeneralizedCELoss: (-log p_t) * p_t**q * q per sample."""
    n, c = logits.shape
    itemsize = jnp.dtype(logits.dtype).itemsize
    sub = 8 * max(1, 4 // itemsize)

    vmem_cap, hbm_step_target, min_steps = _hw_params()
    vmem_limit = min(3 * vmem_cap // 4, 96 * 1024 * 1024)       # 48 MiB on v7x, 96 MiB on v5e/v6e

    if block_rows is None:
        block_rows = _pick_block_rows(n, c, itemsize, vmem_limit, hbm_step_target, min_steps)
    block_rows = max(sub, (block_rows // sub) * sub)

    num_blocks = pl.cdiv(n, block_rows)
    n_pad = num_blocks * block_rows

    # Targets are tiny (4 B/row): pad + reshape to a lane-dense (num_blocks, 1, block_rows) slab.
    # Logits are NOT padded: the ragged last block reads garbage rows that are sliced off below.
    tgt = targets.astype(jnp.int32).reshape(n)
    if n_pad != n:
        tgt = jnp.pad(tgt, (0, n_pad - n))       # padded rows -> class 0 (valid), result discarded
    tgt3 = tgt.reshape(num_blocks, 1, block_rows)

    cost = pl.CostEstimate(
        flops=6 * n * c + 10 * n,
        transcendentals=n * c + 2 * n,
        bytes_accessed=n * c * itemsize + 8 * n,
    )

    out3 = pl.pallas_call(
        _make_kernel(q),
        out_shape=jax.ShapeDtypeStruct((num_blocks, 1, block_rows), jnp.float32),
        grid_spec=pltpu.PrefetchScalarGridSpec(
            num_scalar_prefetch=0,
            grid=(num_blocks,),
            in_specs=[
                pl.BlockSpec((block_rows, c), lambda i: (i, 0)),      # ragged last block is OK
                pl.BlockSpec((1, 1, block_rows), lambda i: (i, 0, 0)),
            ],
            out_specs=pl.BlockSpec((1, 1, block_rows), lambda i: (i, 0, 0)),
        ),
        compiler_params=pltpu.CompilerParams(
            dimension_semantics=("parallel",),
            vmem_limit_bytes=vmem_limit,
        ),
        cost_estimate=cost,
    )(logits, tgt3)

    # Any NaN/inf host assertion (torch module's guard) must run on this sliced result,
    # not on the padded slab (tail lanes of the last block hold garbage from OOB reads).
    return out3.reshape(n_pad)[:n]


def _reference(logits, targets, q=0.7):
    # pure-JAX reference for sanity check
    logp = jax.nn.log_softmax(logits.astype(jnp.float32), axis=1)
    logp_t = jnp.take_along_axis(logp, targets[:, None].astype(jnp.int32), axis=1)[:, 0]
    return (-logp_t) * (jnp.exp(logp_t) ** q) * q


if __name__ == "__main__":
    key = jax.random.PRNGKey(0)
    k1, k2 = jax.random.split(key)

    # small shapes consistent with the module: batch=8, classes=32
    N, C = 8, 32
    logits = jax.random.normal(k1, (N, C), dtype=jnp.float32)
    targets = jax.random.randint(k2, (N,), 0, C, dtype=jnp.int32)

    loss = jax.block_until_ready(generalized_ce_loss(logits, targets, q=0.7))
    ref = _reference(logits, targets, q=0.7)
    assert loss.shape == (N,)
    assert jnp.allclose(loss, ref, atol=1e-5, rtol=1e-5), (loss, ref)
    # The torch module's NaN guard is a host-side assertion on the (sliced) result.
    assert not bool(jnp.isnan(loss).any())

    # exercise the multi-block + ragged-last-block (no logits padding) path
    N2, C2 = 300, 32
    k3, k4 = jax.random.split(k2)
    logits2 = jax.random.normal(k3, (N2, C2), dtype=jnp.float32)
    targets2 = jax.random.randint(k4, (N2,), 0, C2, dtype=jnp.int32)
    loss2 = jax.block_until_ready(generalized_ce_loss(logits2, targets2, q=0.7))
    ref2 = _reference(logits2, targets2, q=0.7)
    assert loss2.shape == (N2,)
    assert jnp.allclose(loss2, ref2, atol=1e-5, rtol=1e-5)
    assert not bool(jnp.isnan(loss2).any())

    print("KERNEL_OK")
</pallas_src>

<mosaic_0001>
module attributes {stable_mosaic.version = 11 : i64} {
  func.func @kernel(%arg0: i32, %arg1: memref<8x32xf32, #tpu.memory_space<vmem>>, %arg2: memref<1x1x8xi32, #tpu.memory_space<vmem>>, %arg3: memref<1x1x8xf32, #tpu.memory_space<vmem>>) attributes {dimension_semantics = [#tpu.dimension_semantics<parallel>], iteration_bounds = array<i64: 1>, scalar_prefetch = 0 : i64, scratch_operands = 0 : i64, tpu.core_type = #tpu.core_type<tc>, window_params = [{transform_indices = @transform_0, window_bounds = array<i64: 8, 32>}, {transform_indices = @transform_1, window_bounds = array<i64: 1, 1, 8>}, {transform_indices = @transform_2, window_bounds = array<i64: 1, 1, 8>}]} {
    %c0 = arith.constant 0 : index
    %c0_0 = arith.constant 0 : index
    %0 = vector.load %arg1[%c0, %c0_0] : memref<8x32xf32, #tpu.memory_space<vmem>>, vector<8x32xf32>
    %c0_1 = arith.constant 0 : index
    %c0_2 = arith.constant 0 : index
    %c0_3 = arith.constant 0 : index
    %1 = vector.load %arg2[%c0_1, %c0_2, %c0_3] : memref<1x1x8xi32, #tpu.memory_space<vmem>>, vector<1x1x8xi32>
    %2 = vector.shape_cast %1 : vector<1x1x8xi32> to vector<1x8xi32>
    %3 = tpu.transpose %2, [1, 0] : vector<1x8xi32> -> vector<8x1xi32>
    %cst = arith.constant dense<0xFF800000> : vector<8xf32>
    %4 = vector.multi_reduction <maximumf>, %0, %cst [1] : vector<8x32xf32> to vector<8xf32>
    %5 = vector.shape_cast %4 : vector<8xf32> to vector<8x1xf32>
    %6 = vector.broadcast %5 : vector<8x1xf32> to vector<8x32xf32>
    %7 = arith.subf %0, %6 : vector<8x32xf32>
    %8 = math.exp %7 : vector<8x32xf32>
    %cst_4 = arith.constant dense<0.000000e+00> : vector<8xf32>
    %9 = vector.multi_reduction <add>, %8, %cst_4 [1] : vector<8x32xf32> to vector<8xf32>
    %10 = vector.shape_cast %9 : vector<8xf32> to vector<8x1xf32>
    %11 = math.log %10 : vector<8x1xf32>
    %12 = tpu.iota {dimensions = array<i32: 1>} : vector<8x32xi32>
    %13 = vector.broadcast %3 : vector<8x1xi32> to vector<8x32xi32>
    %14 = arith.cmpi eq, %12, %13 : vector<8x32xi32>
    %cst_5 = arith.constant 0.000000e+00 : f32
    %15 = vector.broadcast %cst_5 : f32 to vector<8x32xf32>
    %16 = arith.select %14, %7, %15 : vector<8x32xi1>, vector<8x32xf32>
    %cst_6 = arith.constant dense<0.000000e+00> : vector<8xf32>
    %17 = vector.multi_reduction <add>, %16, %cst_6 [1] : vector<8x32xf32> to vector<8xf32>
    %18 = vector.shape_cast %17 : vector<8xf32> to vector<8x1xf32>
    %19 = arith.subf %18, %11 : vector<8x1xf32>
    %cst_7 = arith.constant 0.000000e+00 : f32
    %20 = vector.broadcast %cst_7 : f32 to vector<8x1xf32>
    %21 = arith.subf %20, %19 : vector<8x1xf32>
    %cst_8 = arith.constant 0.699999988 : f32
    %22 = vector.broadcast %cst_8 : f32 to vector<8x1xf32>
    %23 = arith.mulf %22, %19 : vector<8x1xf32>
    %24 = math.exp %23 : vector<8x1xf32>
    %25 = arith.mulf %21, %24 : vector<8x1xf32>
    %cst_9 = arith.constant 0.699999988 : f32
    %26 = vector.broadcast %cst_9 : f32 to vector<8x1xf32>
    %27 = arith.mulf %25, %26 : vector<8x1xf32>
    %28 = tpu.transpose %27, [1, 0] : vector<8x1xf32> -> vector<1x8xf32>
    %c0_10 = arith.constant 0 : index
    %c0_11 = arith.constant 0 : index
    %c0_12 = arith.constant 0 : index
    %29 = vector.load %arg3[%c0_10, %c0_11, %c0_12] : memref<1x1x8xf32, #tpu.memory_space<vmem>>, vector<1x1x8xf32>
    %30 = vector.shape_cast %29 : vector<1x1x8xf32> to vector<1x8xf32>
    %31 = vector.shape_cast %28 : vector<1x8xf32> to vector<1x1x8xf32>
    tpu.vector_store %arg3[%c0_10, %c0_11, %c0_12], %31 {strides = array<i32>} : memref<1x1x8xf32, #tpu.memory_space<vmem>>, vector<1x1x8xf32>,
    return
  }
  func.func @transform_0(%arg0: i32) -> (i32, i32) {
    %c0_i32 = arith.constant 0 : i32
    %c0_i32_0 = arith.constant 0 : i32
    return %arg0, %c0_i32 : i32, i32
  }
  func.func @transform_1(%arg0: i32) -> (i32, i32, i32) {
    %c0_i32 = arith.constant 0 : i32
    %c0_i32_0 = arith.constant 0 : i32
    %c0_i32_1 = arith.constant 0 : i32
    return %arg0, %c0_i32, %c0_i32_0 : i32, i32, i32
  }
  func.func @transform_2(%arg0: i32) -> (i32, i32, i32) {
    %c0_i32 = arith.constant 0 : i32
    %c0_i32_0 = arith.constant 0 : i32
    %c0_i32_1 = arith.constant 0 : i32
    return %arg0, %c0_i32, %c0_i32_0 : i32, i32, i32
  }
}

</mosaic_0001>

<llo_original>
// kernel: tpu_custom_call.1
$region0: #{tpu_custom_call.1}
  #allocation0 [shape = 'u32[]', space=smem, size = 0x4, offset = 0x4, fixed_abs, tag = 'smem constant byte address 0x4 - core index']
  #allocation1 [shape = 'u32[72,128]{1,0:T(1,128)}', space=vmem, size = 0x9000, scoped, tag = 'internal scratch']
  %s0 = inlined_call_operand.hbm [shape: f32[8,32], index: 0, kind: input, shape index: {}]
  %s1 = inlined_call_operand.hbm [shape: s32[1,1,8], index: 1, kind: input, shape index: {}]
  %s2 = inlined_call_operand.hbm [shape: f32[1,1,8], index: 2, kind: output, shape index: {}]
  %s3 = sld [smem:[#allocation0]]
  $region26: #{tpu_custom_call.1} parent=0
    _
  %s5 = ssub.s32 1, %s3
  %s6 = scalar_select 0, %s5, %s3
  $region1: #{tpu_custom_call.1} parent=0
    #allocation2 [shape = 'u8[4096]{0}', space=vmem, size = 0x1000, scoped, tag = 'input window, operand 0, single buffered']
    #allocation3 [shape = 's32[1]{0}', space=sflag, size = 0x4, scoped, tag = 'scoped memory for tpu_custom_call.1']
    #allocation4 [shape = 's32[1]{0}', space=sflag, size = 0x4, scoped, tag = 'scoped memory for tpu_custom_call.1']
    #allocation5 [shape = 'u8[512]{0}', space=vmem, size = 0x400, scoped, tag = 'input window, operand 1, single buffered']
    #allocation6 [shape = 's32[1]{0}', space=sflag, size = 0x4, scoped, tag = 'scoped memory for tpu_custom_call.1']
    #allocation7 [shape = 'u8[512]{0}', space=vmem, size = 0x400, scoped, tag = 'output window, operand 0, single buffered']
    %7 = vsyncpa [#allocation3], 0
    %8 = vsyncpa [#allocation6], 0
    %9 = vsyncpa [#allocation4], 0
    // Predicated region
    $region2: #{tpu_custom_call.1} parent=1 // pred_check
      _
    $region3: #{tpu_custom_call.1} parent=1 // pred_check_branch
      %11 = sbr.rel (0) target = $region5
    $region4: #{tpu_custom_call.1} parent=1 // pred_region
      %13 = vsyncadd [#allocation3], 0
      %s15 = sshll.u32 %s0, 4
      %s16 = int_to_ptr.hbm [resolvable:$true] %s15
      %s17 = sshll.u32 [#allocation2], 4
      %s18 = int_to_ptr.vmem [resolvable:$true] %s17
      %20 = dma.hbm_to_vmem [thread:$0]  %s16, 128, %s18, [#allocation3]
    $region5: #{tpu_custom_call.1} parent=1 // pred_fallthru
      _
    // Predicated region
    $region6: #{tpu_custom_call.1} parent=1 // pred_check
      _
    $region7: #{tpu_custom_call.1} parent=1 // pred_check_branch
      %22 = sbr.rel (0) target = $region9
    $region8: #{tpu_custom_call.1} parent=1 // pred_region
      %24 = vsyncadd [#allocation6], 0
      %s26 = sshll.u32 %s1, 4
      %s27 = int_to_ptr.hbm [resolvable:$true] %s26
      %s28 = sshll.u32 [#allocation5], 4
      %s29 = int_to_ptr.vmem [resolvable:$true] %s28
      %31 = dma.hbm_to_vmem [thread:$0]  %s27, 16, %s29, [#allocation6]
    $region9: #{tpu_custom_call.1} parent=1 // pred_fallthru
      _
    // Predicated region
    $region10: #{tpu_custom_call.1} parent=1 // pred_check
      _
    $region11: #{tpu_custom_call.1} parent=1 // pred_check_branch
      %33 = sbr.rel (0) target = $region13
    $region12: #{tpu_custom_call.1} parent=1 // pred_region
      %35 = dma.done [#allocation3], 128
    $region13: #{tpu_custom_call.1} parent=1 // pred_fallthru
      _
    // Predicated region
    $region14: #{tpu_custom_call.1} parent=1 // pred_check
      _
    $region15: #{tpu_custom_call.1} parent=1 // pred_check_branch
      %37 = sbr.rel (0) target = $region17
    $region16: #{tpu_custom_call.1} parent=1 // pred_region
      %39 = dma.done [#allocation6], 16
    $region17: #{tpu_custom_call.1} parent=1 // pred_fallthru
      _
    %v40 = vld [vmem:[#allocation2] sm:$0xff]
    %v41 = vld [vmem:[#allocation5] sm:$0x1]
    %42 = vxpose.xlu0.b32.start [1/16] %v41, 128
    %43 = vxpose.xlu0.b32.cont [2/16] 0, 128
    %44 = vxpose.xlu0.b32.cont [3/16] 0, 128
    %45 = vxpose.xlu0.b32.cont [4/16] 0, 128
    %46 = vxpose.xlu0.b32.cont [5/16] 0, 128
    %47 = vxpose.xlu0.b32.cont [6/16] 0, 128
    %48 = vxpose.xlu0.b32.cont [7/16] 0, 128
    %49 = vxpose.xlu0.b32.cont [8/16] 0, 128
    %50 = vxpose.xlu0.b32.cont [9/16] 0, 128
    %51 = vxpose.xlu0.b32.cont [10/16] 0, 128
    %52 = vxpose.xlu0.b32.cont [11/16] 0, 128
    %53 = vxpose.xlu0.b32.cont [12/16] 0, 128
    %54 = vxpose.xlu0.b32.cont [13/16] 0, 128
    %55 = vxpose.xlu0.b32.cont [14/16] 0, 128
    %56 = vxpose.xlu0.b32.cont [15/16] 0, 128
    %57 = vxpose.xlu0.b32.end [16/16] 0, 128
    %v58 = vpop.trf.xlu0
    %v59 = vpop.trf.xlu0
    %v60 = vpop.trf.xlu0
    %v61 = vpop.trf.xlu0
    %v62 = vpop.trf.xlu0
    %v63 = vpop.trf.xlu0
    %v64 = vpop.trf.xlu0
    %v65 = vpop.trf.xlu0
    %v66 = vpop.trf.xlu0
    %v67 = vpop.trf.xlu0
    %v68 = vpop.trf.xlu0
    %v69 = vpop.trf.xlu0
    %v70 = vpop.trf.xlu0
    %v71 = vpop.trf.xlu0
    %v72 = vpop.trf.xlu0
    %v73 = vpop.trf.xlu0
    %vm74 = vcmask 261120
    %v75 = vsel %vm74, %v40, -inf
    %76 = vmax.xlane.f32.xlu0 %v75
    %v77 = vpop.xlane.xlu0 %76
    %v78 = vsub.f32 %v40, %v77
    %v79 = vmul.f32 %v78, 1.442695
    %v80 = vpow.pop %v79
    %v81 = vsel %vm74, %v80, 0.0
    %82 = vadd.xlane.f32.xlu0 %v81
    %v83 = vpop.xlane.xlu0 %82
    %v84 = vlog2.pop %v83
    %v85 = vmul.f32 %v84, 0.6931472
    %v86 = vlaneseq
    %v87 = vand.u32 %v86, 127
    %88 = vset.pattern.permute.xlu0 0
    %89 = vperm.xlu0 %88, %v58
    %v90 = vpop.permute.xlu0 %89
    %vm91 = vcmp.eq.s32.totalorder %v87, %v90
    %v92 = vsel %vm91, %v78, 0.0
    %v93 = vsel %vm74, %v92, 0.0
    %94 = vadd.xlane.f32.xlu0 %v93
    %v95 = vpop.xlane.xlu0 %94
    %v96 = vsub.f32 %v95, %v85
    %v97 = vsub.f32 0.0, %v96
    %v98 = vmul.f32 %v96, 0.7
    %v99 = vmul.f32 %v98, 1.442695
    %v100 = vpow.pop %v99
    %v101 = vmul.f32 %v97, %v100
    %v102 = vmul.f32 %v101, 0.7
    %103 = vxpose.xlu0.b32.start [1/16] %v102, 128
    %104 = vxpose.xlu0.b32.cont [2/16] 0.0, 128
    %105 = vxpose.xlu0.b32.cont [3/16] 0.0, 128
    %106 = vxpose.xlu0.b32.cont [4/16] 0.0, 128
    %107 = vxpose.xlu0.b32.cont [5/16] 0.0, 128
    %108 = vxpose.xlu0.b32.cont [6/16] 0.0, 128
    %109 = vxpose.xlu0.b32.cont [7/16] 0.0, 128
    %110 = vxpose.xlu0.b32.cont [8/16] 0.0, 128
    %111 = vxpose.xlu0.b32.cont [9/16] 0.0, 128
    %112 = vxpose.xlu0.b32.cont [10/16] 0.0, 128
    %113 = vxpose.xlu0.b32.cont [11/16] 0.0, 128
    %114 = vxpose.xlu0.b32.cont [12/16] 0.0, 128
    %115 = vxpose.xlu0.b32.cont [13/16] 0.0, 128
    %116 = vxpose.xlu0.b32.cont [14/16] 0.0, 128
    %117 = vxpose.xlu0.b32.cont [15/16] 0.0, 128
    %118 = vxpose.xlu0.b32.end [16/16] 0.0, 128
    %v119 = vpop.trf.xlu0
    %v120 = vpop.trf.xlu0
    %v121 = vpop.trf.xlu0
    %v122 = vpop.trf.xlu0
    %v123 = vpop.trf.xlu0
    %v124 = vpop.trf.xlu0
    %v125 = vpop.trf.xlu0
    %v126 = vpop.trf.xlu0
    %v127 = vpop.trf.xlu0
    %v128 = vpop.trf.xlu0
    %v129 = vpop.trf.xlu0
    %v130 = vpop.trf.xlu0
    %v131 = vpop.trf.xlu0
    %v132 = vpop.trf.xlu0
    %v133 = vpop.trf.xlu0
    %v134 = vpop.trf.xlu0
    %vm135 = vcmask 57344
    %136 = vst.msk [vmem:[#allocation7] sm:$0x1] %vm135, %v119
    // Predicated region
    $region18: #{tpu_custom_call.1} parent=1 // pred_check
      _
    $region19: #{tpu_custom_call.1} parent=1 // pred_check_branch
      %138 = sbr.rel (0) target = $region21
    $region20: #{tpu_custom_call.1} parent=1 // pred_region
      %140 = vsyncadd [#allocation4], 0
      %s142 = sshll.u32 [#allocation7], 4
      %s143 = int_to_ptr.vmem [resolvable:$true] %s142
      %s144 = sshll.u32 %s2, 4
      %s145 = int_to_ptr.hbm [resolvable:$true] %s144
      %147 = dma.vmem_to_hbm [thread:$0]  %s143, 16, %s145, [#allocation4]
    $region21: #{tpu_custom_call.1} parent=1 // pred_fallthru
      _
    // Predicated region
    $region22: #{tpu_custom_call.1} parent=1 // pred_check
      _
    $region23: #{tpu_custom_call.1} parent=1 // pred_check_branch
      %149 = sbr.rel (0) target = $region25
    $region24: #{tpu_custom_call.1} parent=1 // pred_region
      %151 = dma.done [#allocation4], 16
    $region25: #{tpu_custom_call.1} parent=1 // pred_fallthru
      _
    %152 = vsyncpa [#allocation3], 1
    %153 = vsyncpa [#allocation6], 1
    %154 = vsyncpa [#allocation4], 1

</llo_original>
